<compile_context>
chip_gen: v6e
topology: v6e:2x2x1
jax: 0.10.0
libtpu: 0.0.40
codegen_flags: <defaults>
</compile_context>

<pallas_src>
import functools

import jax
import jax.numpy as jnp
from jax.experimental import pallas as pl
from jax.experimental.pallas import tpu as pltpu


_HIDDEN = (64, 32, 16)


def _round_up(x, m):
    return (x + m - 1) // m * m


def _cdiv(a, b):
    return (a + b - 1) // b


def _layer_offsets(state_dim, action_dim):
    """Geometry of the packed, transposed weight slab.

    Layer i occupies rows [offs[i], offs[i] + rowcounts[i]):
      hidden layers: [fan_out + 1, fan_in + 1]  (bias column + ones-carry row)
      fused head:    [2 * action_dim, 16 + 1]   (bias column only)
    Every block starts at a sublane-aligned (multiple-of-8) row offset.
    """
    fan_ins = (state_dim,) + _HIDDEN                 # (S, 64, 32, 16)
    fan_outs = _HIDDEN + (2 * action_dim,)           # (64, 32, 16, 2A)
    offs, rowcounts = [], []
    r = 0
    for li, fo in enumerate(fan_outs):
        rows = fo + (1 if li < len(fan_outs) - 1 else 0)
        offs.append(r)
        rowcounts.append(rows)
        r += _round_up(rows, 8)
    return tuple(offs), tuple(rowcounts), tuple(fan_ins), r


def _slab_cols(state_dim):
    # Lane dimension padded to a full 128-lane multiple (zero-filled).
    return _round_up(max(state_dim + 1, max(_HIDDEN) + 1), 128)


def _actor_kernel(state_dim, action_dim, offs, rowcounts, fan_ins):
    """Kernel closed over static layer geometry."""
    A = action_dim

    def kernel(ab_ref, state_ref, slab_ref, out_ref):
        ab = ab_ref[0, 0]                 # action_bound (SMEM scalar)
        h = state_ref[...]                # [state_dim+1, TB], last row == 1

        # Three hidden Linear+ReLU layers; bias folded in via the ones row,
        # which each augmented weight block propagates (ReLU(1) == 1).
        for li in range(3):
            r, rows, fi = offs[li], rowcounts[li], fan_ins[li]
            w = slab_ref[r:r + rows, 0:fi + 1]          # [fo+1, fi+1]
            h = jnp.maximum(
                jnp.dot(w, h, preferred_element_type=jnp.float32), 0.0)

        # Fused mu|std head: [2A, 17] @ [17, TB] -> z = [2A, TB]
        r, rows, fi = offs[3], rowcounts[3], fan_ins[3]
        wh = slab_ref[r:r + rows, 0:fi + 1]
        z = jnp.dot(wh, h, preferred_element_type=jnp.float32)

        # Full-tile compute + sublane mask (no slices / concatenation):
        #   rows < A  -> tanh(z) * action_bound
        #   rows >= A -> softplus(z)   (numerically stable form)
        mu_full = jnp.tanh(z) * ab
        std_full = jnp.log1p(jnp.exp(-jnp.abs(z))) + jnp.maximum(z, 0.0)
        row_id = jax.lax.broadcasted_iota(jnp.int32, z.shape, 0)
        out_ref[...] = jnp.where(row_id < A, mu_full, std_full).astype(
            out_ref.dtype)

    return kernel


def pack_actor_params(params, state_dim, action_dim):
    """Pack the 5 (W, b) pairs into one transposed, lane-padded f32 slab."""
    (w1, b1), (w2, b2), (w3, b3), (wmu, bmu), (wstd, bstd) = params
    offs, rowcounts, fan_ins, total_rows = _layer_offsets(state_dim, action_dim)
    cols = _slab_cols(state_dim)
    slab = jnp.zeros((total_rows, cols), jnp.float32)

    w_head = jnp.concatenate([wmu, wstd], axis=1)                     # [16, 2A]
    b_head = jnp.concatenate([bmu.reshape(1, -1), bstd.reshape(1, -1)], axis=1)

    layers = [(w1, b1, True), (w2, b2, True), (w3, b3, True),
              (w_head, b_head, False)]
    for (w, b, carry), r in zip(layers, offs):
        fi, fo = w.shape
        rows = fo + (1 if carry else 0)
        blk = jnp.zeros((rows, fi + 1), jnp.float32)
        blk = blk.at[:fo, :fi].set(jnp.asarray(w, jnp.float32).T)     # W^T
        blk = blk.at[:fo, fi].set(jnp.asarray(b, jnp.float32).reshape(-1))
        if carry:
            blk = blk.at[fo, fi].set(1.0)     # ones-row propagation
        slab = slab.at[r:r + rows, 0:fi + 1].set(blk)
    return slab


@functools.partial(jax.jit, static_argnames=("action_dim", "block_b"))
def actor_forward(state, slab, action_bound, *, action_dim, block_b=256):
    """state: [B, state_dim] f32. Returns [mu, std], each [B, action_dim]."""
    B, state_dim = state.shape
    A = action_dim
    SD1 = state_dim + 1
    offs, rowcounts, fan_ins, total_rows = _layer_offsets(state_dim, A)
    cols = slab.shape[1]

    # Batch-on-lanes input with a folded-in constant-1 row for the bias.
    ones = jnp.ones((1, B), jnp.float32)
    state_t = jnp.concatenate([state.astype(jnp.float32).T, ones], axis=0)

    # Lane-aligned batch tile; >= 2 grid steps when B > 128 (v7x dual-TC).
    if B <= 128:
        TB = B
    else:
        tb = min(block_b, _round_up(_cdiv(B, 2), 128))
        TB = max(128, (tb // 128) * 128)
    grid = (_cdiv(B, TB),)

    ab = jnp.asarray(action_bound, jnp.float32).reshape(1, 1)

    flops = 2 * B * (SD1 * rowcounts[0] + (fan_ins[1] + 1) * rowcounts[1]
                     + (fan_ins[2] + 1) * rowcounts[2]
                     + (fan_ins[3] + 1) * rowcounts[3])
    bytes_accessed = (state_t.size + slab.size + 2 * A * B) * 4 + 4
    cost = pl.CostEstimate(flops=flops, transcendentals=4 * B * A,
                           bytes_accessed=bytes_accessed)

    out = pl.pallas_call(
        _actor_kernel(state_dim, A, offs, rowcounts, fan_ins),
        out_shape=jax.ShapeDtypeStruct((2 * A, B), jnp.float32),
        grid=grid,
        in_specs=[
            # action_bound scalar lives in SMEM, untiled.
            pl.BlockSpec(memory_space=pltpu.MemorySpace.SMEM),
            # state: batch-tiled on the lane axis (auto-pipelined).
            pl.BlockSpec((SD1, TB), lambda i: (0, i)),
            # packed weights: same block every iteration -> VMEM-resident.
            pl.BlockSpec((total_rows, cols), lambda i: (0, 0)),
        ],
        out_specs=pl.BlockSpec((2 * A, TB), lambda i: (0, i)),
        compiler_params=pltpu.CompilerParams(
            dimension_semantics=("parallel",)),
        cost_estimate=cost,
    )(ab, state_t, slab)

    mu = out[:A, :].T
    std = out[A:, :].T
    return [mu, std]


def init_actor_params(key, state_dim, action_dim):
    """PyTorch-style init: U(-1/sqrt(fan_in), 1/sqrt(fan_in)).

    Weights stored as [in_features, out_features]; biases as [1, out]."""
    dims = [(state_dim, 64), (64, 32), (32, 16), (16, action_dim),
            (16, action_dim)]
    params = []
    for (fan_in, fan_out) in dims:
        key, kw, kb = jax.random.split(key, 3)
        bound = 1.0 / jnp.sqrt(jnp.float32(fan_in))
        w = jax.random.uniform(kw, (fan_in, fan_out), jnp.float32,
                               minval=-bound, maxval=bound)
        b = jax.random.uniform(kb, (1, fan_out), jnp.float32,
                               minval=-bound, maxval=bound)
        params.append((w, b))
    return params


def actor_reference(state, params, action_bound):
    (w1, b1), (w2, b2), (w3, b3), (wmu, bmu), (wstd, bstd) = params
    h = jnp.maximum(state @ w1 + b1, 0.0)
    h = jnp.maximum(h @ w2 + b2, 0.0)
    h = jnp.maximum(h @ w3 + b3, 0.0)
    mu = jnp.tanh(h @ wmu + bmu) * action_bound
    std = jax.nn.softplus(h @ wstd + bstd)
    return mu, std


if __name__ == "__main__":
    # Small shapes consistent with a typical A2C continuous-control actor.
    batch = 8
    state_dim = 3
    action_dim = 1
    action_bound = 2.0

    key = jax.random.PRNGKey(0)
    key, kstate = jax.random.split(key)
    state = jax.random.normal(kstate, (batch, state_dim), dtype=jnp.float32)

    params = init_actor_params(key, state_dim, action_dim)
    slab = pack_actor_params(params, state_dim, action_dim)

    mu, std = actor_forward(state, slab, action_bound, action_dim=action_dim)
    jax.block_until_ready(mu)
    jax.block_until_ready(std)

    assert mu.shape == (batch, action_dim) and std.shape == (batch, action_dim)
    # sanity: mu bounded by action_bound, std strictly positive (softplus)
    assert bool(jnp.all(jnp.abs(mu) <= action_bound + 1e-5))
    assert bool(jnp.all(std > 0.0))

    # cross-check against pure-JAX reference of the original module
    mu_ref, std_ref = actor_reference(state, params, action_bound)
    assert bool(jnp.allclose(mu, mu_ref, atol=1e-5, rtol=1e-4))
    assert bool(jnp.allclose(std, std_ref, atol=1e-5, rtol=1e-4))

    print("KERNEL_OK")
</pallas_src>

<mosaic_0001>
module attributes {stable_mosaic.version = 11 : i64} {
  func.func @kernel(%arg0: i32, %arg1: memref<1x1xf32, #tpu.memory_space<smem>>, %arg2: memref<4x8xf32, #tpu.memory_space<vmem>>, %arg3: memref<144x128xf32, #tpu.memory_space<vmem>>, %arg4: memref<2x8xf32, #tpu.memory_space<vmem>>) attributes {dimension_semantics = [#tpu.dimension_semantics<parallel>], iteration_bounds = array<i64: 1>, scalar_prefetch = 0 : i64, scratch_operands = 0 : i64, tpu.core_type = #tpu.core_type<tc>, window_params = [{transform_indices = @transform_0, window_bounds = array<i64: 1, 1>}, {transform_indices = @transform_1, window_bounds = array<i64: 4, 8>}, {pipeline_mode = #tpu.pipeline_mode<synchronous>, transform_indices = @transform_2, window_bounds = array<i64: 144, 128>}, {transform_indices = @transform_3, window_bounds = array<i64: 2, 8>}]} {
    %c0 = arith.constant 0 : index
    %c0_0 = arith.constant 0 : index
    %0 = memref.load %arg1[%c0, %c0_0] : memref<1x1xf32, #tpu.memory_space<smem>>
    %c0_1 = arith.constant 0 : index
    %c0_2 = arith.constant 0 : index
    %1 = vector.load %arg2[%c0_1, %c0_2] : memref<4x8xf32, #tpu.memory_space<vmem>>, vector<4x8xf32>
    %c0_3 = arith.constant 0 : index
    %c0_4 = arith.constant 0 : index
    %2 = vector.load %arg3[%c0_3, %c0_4] : memref<144x128xf32, #tpu.memory_space<vmem>>, vector<65x4xf32>
    %cst = arith.constant dense<0.000000e+00> : vector<65x8xf32>
    %3 = tpu.matmul %2, %1, %cst {dimension_numbers = #tpu.dot_dimension_numbers<[1], [0], [0], [1], [0, 0, 1, 1], [], []>} : vector<65x4xf32>, vector<4x8xf32>, vector<65x8xf32> -> vector<65x8xf32>
    %cst_5 = arith.constant 0.000000e+00 : f32
    %4 = vector.broadcast %cst_5 : f32 to vector<65x8xf32>
    %5 = arith.maximumf %3, %4 : vector<65x8xf32>
    %c72 = arith.constant 72 : index
    %c0_6 = arith.constant 0 : index
    %6 = vector.load %arg3[%c72, %c0_6] : memref<144x128xf32, #tpu.memory_space<vmem>>, vector<33x65xf32>
    %cst_7 = arith.constant dense<0.000000e+00> : vector<33x8xf32>
    %7 = tpu.matmul %6, %5, %cst_7 {dimension_numbers = #tpu.dot_dimension_numbers<[1], [0], [0], [1], [0, 0, 1, 1], [], []>} : vector<33x65xf32>, vector<65x8xf32>, vector<33x8xf32> -> vector<33x8xf32>
    %cst_8 = arith.constant 0.000000e+00 : f32
    %8 = vector.broadcast %cst_8 : f32 to vector<33x8xf32>
    %9 = arith.maximumf %7, %8 : vector<33x8xf32>
    %c112 = arith.constant 112 : index
    %c0_9 = arith.constant 0 : index
    %10 = vector.load %arg3[%c112, %c0_9] : memref<144x128xf32, #tpu.memory_space<vmem>>, vector<17x33xf32>
    %cst_10 = arith.constant dense<0.000000e+00> : vector<17x8xf32>
    %11 = tpu.matmul %10, %9, %cst_10 {dimension_numbers = #tpu.dot_dimension_numbers<[1], [0], [0], [1], [0, 0, 1, 1], [], []>} : vector<17x33xf32>, vector<33x8xf32>, vector<17x8xf32> -> vector<17x8xf32>
    %cst_11 = arith.constant 0.000000e+00 : f32
    %12 = vector.broadcast %cst_11 : f32 to vector<17x8xf32>
    %13 = arith.maximumf %11, %12 : vector<17x8xf32>
    %c136 = arith.constant 136 : index
    %c0_12 = arith.constant 0 : index
    %14 = vector.load %arg3[%c136, %c0_12] : memref<144x128xf32, #tpu.memory_space<vmem>>, vector<2x17xf32>
    %cst_13 = arith.constant dense<0.000000e+00> : vector<2x8xf32>
    %15 = tpu.matmul %14, %13, %cst_13 {dimension_numbers = #tpu.dot_dimension_numbers<[1], [0], [0], [1], [0, 0, 1, 1], [], []>} : vector<2x17xf32>, vector<17x8xf32>, vector<2x8xf32> -> vector<2x8xf32>
    %16 = math.tanh %15 : vector<2x8xf32>
    %17 = vector.broadcast %0 : f32 to vector<2x8xf32>
    %18 = arith.mulf %16, %17 : vector<2x8xf32>
    %19 = math.absf %15 : vector<2x8xf32>
    %cst_14 = arith.constant 0.000000e+00 : f32
    %20 = vector.broadcast %cst_14 : f32 to vector<2x8xf32>
    %21 = arith.subf %20, %19 : vector<2x8xf32>
    %22 = math.exp %21 : vector<2x8xf32>
    %23 = math.log1p %22 : vector<2x8xf32>
    %cst_15 = arith.constant 0.000000e+00 : f32
    %24 = vector.broadcast %cst_15 : f32 to vector<2x8xf32>
    %25 = arith.maximumf %15, %24 : vector<2x8xf32>
    %26 = arith.addf %23, %25 : vector<2x8xf32>
    %27 = tpu.iota {dimensions = array<i32: 0>} : vector<2x8xi32>
    %c1_i32 = arith.constant 1 : i32
    %28 = vector.broadcast %c1_i32 : i32 to vector<2x8xi32>
    %29 = arith.cmpi slt, %27, %28 : vector<2x8xi32>
    %30 = arith.select %29, %18, %26 : vector<2x8xi1>, vector<2x8xf32>
    %c0_16 = arith.constant 0 : index
    %c0_17 = arith.constant 0 : index
    %31 = vector.load %arg4[%c0_16, %c0_17] : memref<2x8xf32, #tpu.memory_space<vmem>>, vector<2x8xf32>
    tpu.vector_store %arg4[%c0_16, %c0_17], %30 {strides = array<i32>} : memref<2x8xf32, #tpu.memory_space<vmem>>, vector<2x8xf32>,
    return
  }
  func.func @transform_0(%arg0: i32) -> (i32, i32) {
    %c0_i32 = arith.constant 0 : i32
    %c0_i32_0 = arith.constant 0 : i32
    %c0_i32_1 = arith.constant 0 : i32
    return %c0_i32, %c0_i32_0 : i32, i32
  }
  func.func @transform_1(%arg0: i32) -> (i32, i32) {
    %c0_i32 = arith.constant 0 : i32
    %c0_i32_0 = arith.constant 0 : i32
    return %c0_i32, %arg0 : i32, i32
  }
  func.func @transform_2(%arg0: i32) -> (i32, i32) {
    %c0_i32 = arith.constant 0 : i32
    %c0_i32_0 = arith.constant 0 : i32
    %c0_i32_1 = arith.constant 0 : i32
    return %c0_i32, %c0_i32_0 : i32, i32
  }
  func.func @transform_3(%arg0: i32) -> (i32, i32) {
    %c0_i32 = arith.constant 0 : i32
    %c0_i32_0 = arith.constant 0 : i32
    return %c0_i32, %arg0 : i32, i32
  }
}

</mosaic_0001>

<llo_original>
// kernel: actor_forward.1
$region0: #{actor_forward.1}
  #allocation0 [shape = 'u32[]', space=smem, size = 0x4, offset = 0x4, fixed_abs, tag = 'smem constant byte address 0x4 - core index']
  #allocation1 [shape = 'u32[144,128]{1,0:T(1,128)}', space=vmem, size = 0x12000, scoped, tag = 'internal scratch']
  #allocation2 [shape = 'f32[1,1]{1,0:T(1,128)S(6)}', space=smem, size = 0x200, scoped, tag = 'scoped memory for actor_forward.1']
  %s0 = inlined_call_operand.<no memory space> [shape: f32[1,1], index: 0, kind: input, shape index: {}]
  %s1 = inlined_call_operand.vmem [shape: f32[4,8], index: 1, kind: input, shape index: {}]
  %s2 = inlined_call_operand.hbm [shape: f32[144,128], index: 2, kind: input, shape index: {}]
  %s3 = inlined_call_operand.vmem [shape: f32[2,8], index: 3, kind: output, shape index: {}]
  %s4 = sld [smem:[#allocation0]]
  $region26: #{actor_forward.1} parent=0
    _
  %s6 = ssub.s32 1, %s4
  %s7 = scalar_select 0, %s6, %s4
  %8 = sst [smem:[#allocation2]] %s0
  $region1: #{actor_forward.1} parent=0
    #allocation3 [shape = 'u8[73728]{0}', space=vmem, size = 0x12000, scoped, tag = 'input window, operand 2, single buffered']
    #allocation4 [shape = 's32[1]{0}', space=sflag, size = 0x4, scoped, tag = 'scoped memory for actor_forward.1']
    %9 = vsyncpa [#allocation4], 0
    // Predicated region
    $region2: #{actor_forward.1} parent=1 // pred_check
      _
    $region3: #{actor_forward.1} parent=1 // pred_check_branch
      %11 = sbr.rel (0) target = $region5
    $region4: #{actor_forward.1} parent=1 // pred_region
      _
    $region5: #{actor_forward.1} parent=1 // pred_fallthru
      _
    // Predicated region
    $region6: #{actor_forward.1} parent=1 // pred_check
      _
    $region7: #{actor_forward.1} parent=1 // pred_check_branch
      %13 = sbr.rel (0) target = $region9
    $region8: #{actor_forward.1} parent=1 // pred_region
      _
    $region9: #{actor_forward.1} parent=1 // pred_fallthru
      _
    // Predicated region
    $region10: #{actor_forward.1} parent=1 // pred_check
      _
    $region11: #{actor_forward.1} parent=1 // pred_check_branch
      %15 = sbr.rel (0) target = $region13
    $region12: #{actor_forward.1} parent=1 // pred_region
      %s17 = ssub.s32 2304, 2304
      %18 = vsyncadd [#allocation4], %s17
      %s19 = sshll.u32 [#allocation3], 4
      %s20 = int_to_ptr.vmem [resolvable:$true] %s19
      %25 = dma.hbm_to_vmem [thread:$0]  %s2, 2304, %s20, [#allocation4], 128, 128, 8
    $region13: #{actor_forward.1} parent=1 // pred_fallthru
      _
    // Predicated region
    $region14: #{actor_forward.1} parent=1 // pred_check
      _
    $region15: #{actor_forward.1} parent=1 // pred_check_branch
      %27 = sbr.rel (0) target = $region17
    $region16: #{actor_forward.1} parent=1 // pred_region
      %28 = dma.done [#allocation4], 2304
    $region17: #{actor_forward.1} parent=1 // pred_fallthru
      _
    %s29 = sld [smem:[#allocation2]]
    %v30 = vld [vmem:[%s1] sm:$0xf]
    %v31 = vld [vmem:[#allocation3] sm:$0xff]
    %v32 = vld [vmem:[#allocation3 + $0x8] sm:$0xff]
    %v33 = vld [vmem:[#allocation3 + $0x10] sm:$0xff]
    %v34 = vld [vmem:[#allocation3 + $0x18] sm:$0xff]
    %v35 = vld [vmem:[#allocation3 + $0x20] sm:$0xff]
    %v36 = vld [vmem:[#allocation3 + $0x28] sm:$0xff]
    %v37 = vld [vmem:[#allocation3 + $0x30] sm:$0xff]
    %v38 = vld [vmem:[#allocation3 + $0x38] sm:$0xff]
    %v39 = vld [vmem:[#allocation3 + $0x40] sm:$0x1]
    %vm40 = vcmask 31744
    %v42 = vsel %vm40, %v31, 0
    %v45 = vsel %vm40, %v32, 0
    %v48 = vsel %vm40, %v33, 0
    %v51 = vsel %vm40, %v34, 0
    %v54 = vsel %vm40, %v35, 0
    %v57 = vsel %vm40, %v36, 0
    %v60 = vsel %vm40, %v37, 0
    %v63 = vsel %vm40, %v38, 0
    %v66 = vsel %vm40, %v39, 0
    %vm68 = vcmask 1043456
    %v70 = vsel %vm68, %v30, 0
    %72 = vmatprep.subr.mxu0 0.0
    %73 = vmatpush1.msra.mxu0 0.0
    %74 = vmatprep.subr.mxu0 0.0
    %75 = vmatpush1.msra.mxu0 0.0
    %76 = vmatprep.subr.mxu0 0.0
    %77 = vmatpush1.msra.mxu0 0.0
    %78 = vmatprep.subr.mxu0 0.0
    %79 = vmatpush1.msra.mxu0 0.0
    %80 = vmatprep.subr.mxu0 0.0
    %81 = vmatpush1.msra.mxu0 0.0
    %82 = vmatprep.subr.mxu0 0.0
    %83 = vmatpush1.msra.mxu0 0.0
    %84 = vmatprep.subr.mxu0 0.0
    %85 = vmatpush1.msra.mxu0 0.0
    %86 = vmatprep.subr.mxu0 0.0
    %87 = vmatpush1.msra.mxu0 0.0
    %88 = vmatprep.subr.mxu0 0.0
    %89 = vmatpush1.msra.mxu0 0.0
    %90 = vmatprep.subr.mxu0 0.0
    %91 = vmatpush1.msra.mxu0 0.0
    %92 = vmatprep.subr.mxu0 0.0
    %93 = vmatpush1.msra.mxu0 0.0
    %94 = vmatprep.subr.mxu0 0.0
    %95 = vmatpush1.msra.mxu0 0.0
    %96 = vmatprep.subr.mxu0 0.0
    %97 = vmatpush1.msra.mxu0 0.0
    %98 = vmatprep.subr.mxu0 0.0
    %99 = vmatpush1.msra.mxu0 0.0
    %100 = vmatprep.subr.mxu0 0.0
    %101 = vmatpush1.msra.mxu0 0.0
    %102 = vmatprep.subr.mxu0 0.0
    %103 = vmatpush1.msra.mxu0 %v70
    %104 = vmatprep.subr.mxu0 0.0
    %105 = vmatpush2.msra.mxu0 0.0
    %106 = vmatprep.subr.mxu0 0.0
    %107 = vmatpush2.msra.mxu0 0.0
    %108 = vmatprep.subr.mxu0 0.0
    %109 = vmatpush2.msra.mxu0 0.0
    %110 = vmatprep.subr.mxu0 0.0
    %111 = vmatpush2.msra.mxu0 0.0
    %112 = vmatprep.subr.mxu0 0.0
    %113 = vmatpush2.msra.mxu0 0.0
    %114 = vmatprep.subr.mxu0 0.0
    %115 = vmatpush2.msra.mxu0 0.0
    %116 = vmatprep.subr.mxu0 0.0
    %117 = vmatpush2.msra.mxu0 0.0
    %118 = vmatprep.subr.mxu0 0.0
    %119 = vmatpush2.msra.mxu0 0.0
    %120 = vmatprep.subr.mxu0 0.0
    %121 = vmatpush2.msra.mxu0 0.0
    %122 = vmatprep.subr.mxu0 0.0
    %123 = vmatpush2.msra.mxu0 0.0
    %124 = vmatprep.subr.mxu0 0.0
    %125 = vmatpush2.msra.mxu0 0.0
    %126 = vmatprep.subr.mxu0 0.0
    %127 = vmatpush2.msra.mxu0 0.0
    %128 = vmatprep.subr.mxu0 0.0
    %129 = vmatpush2.msra.mxu0 0.0
    %130 = vmatprep.subr.mxu0 0.0
    %131 = vmatpush2.msra.mxu0 0.0
    %132 = vmatprep.subr.mxu0 0.0
    %133 = vmatpush2.msra.mxu0 0.0
    %134 = vmatprep.subr.mxu0 0.0
    %135 = vmatpush2.msra.mxu0 0.0
    %136 = vmatprep.mubr.f32.mxu0 0.0
    %137 = vmatmul.mubr.f32.gmra.mxu0 %v42
    %v138 = vpop.f32.mrf.mxu0
    %v139 = vadd.f32 0.0, %v138
    %v140 = vpop.f32.mrf.mxu0
    %141 = vmatprep.mubr.f32.mxu0 0.0
    %142 = vmatmul.mubr.f32.gmra.mxu0 %v45
    %v143 = vpop.f32.mrf.mxu0
    %v144 = vadd.f32 0.0, %v143
    %v145 = vpop.f32.mrf.mxu0
    %146 = vmatprep.mubr.f32.mxu0 0.0
    %147 = vmatmul.mubr.f32.gmra.mxu0 %v48
    %v148 = vpop.f32.mrf.mxu0
    %v149 = vadd.f32 0.0, %v148
    %v150 = vpop.f32.mrf.mxu0
    %151 = vmatprep.mubr.f32.mxu0 0.0
    %152 = vmatmul.mubr.f32.gmra.mxu0 %v51
    %v153 = vpop.f32.mrf.mxu0
    %v154 = vadd.f32 0.0, %v153
    %v155 = vpop.f32.mrf.mxu0
    %156 = vmatprep.mubr.f32.mxu0 0.0
    %157 = vmatmul.mubr.f32.gmra.mxu0 %v54
    %v158 = vpop.f32.mrf.mxu0
    %v159 = vadd.f32 0.0, %v158
    %v160 = vpop.f32.mrf.mxu0
    %161 = vmatprep.mubr.f32.mxu0 0.0
    %162 = vmatmul.mubr.f32.gmra.mxu0 %v57
    %v163 = vpop.f32.mrf.mxu0
    %v164 = vadd.f32 0.0, %v163
    %v165 = vpop.f32.mrf.mxu0
    %166 = vmatprep.mubr.f32.mxu0 0.0
    %167 = vmatmul.mubr.f32.gmra.mxu0 %v60
    %v168 = vpop.f32.mrf.mxu0
    %v169 = vadd.f32 0.0, %v168
    %v170 = vpop.f32.mrf.mxu0
    %171 = vmatprep.mubr.f32.mxu0 0.0
    %172 = vmatmul.mubr.f32.gmra.mxu0 %v63
    %v173 = vpop.f32.mrf.mxu0
    %v174 = vadd.f32 0.0, %v173
    %v175 = vpop.f32.mrf.mxu0
    %176 = vmatprep.mubr.f32.mxu0 0.0
    %177 = vmatmul.mubr.f32.gmra.mxu0 %v66
    %v178 = vpop.f32.mrf.mxu0
    %v179 = vadd.f32 0.0, %v178
    %v180 = vpop.f32.mrf.mxu0
    %181 = vdwg.mxu0
    %v182 = vmax.f32 %v139, 0.0
    %v183 = vmax.f32 %v144, 0.0
    %v184 = vmax.f32 %v149, 0.0
    %v185 = vmax.f32 %v154, 0.0
    %v186 = vmax.f32 %v159, 0.0
    %v187 = vmax.f32 %v164, 0.0
    %v188 = vmax.f32 %v169, 0.0
    %v189 = vmax.f32 %v174, 0.0
    %v190 = vmax.f32 %v179, 0.0
    %v191 = vld [vmem:[#allocation3 + $0x48] sm:$0xff]
    %v192 = vld [vmem:[#allocation3 + $0x50] sm:$0xff]
    %v193 = vld [vmem:[#allocation3 + $0x58] sm:$0xff]
    %v194 = vld [vmem:[#allocation3 + $0x60] sm:$0xff]
    %v195 = vld [vmem:[#allocation3 + $0x68] sm:$0x1]
    %vm196 = vcmask 531456
    %v198 = vsel %vm196, %v191, 0
    %v201 = vsel %vm196, %v192, 0
    %v204 = vsel %vm196, %v193, 0
    %v207 = vsel %vm196, %v194, 0
    %v210 = vsel %vm196, %v195, 0
    %vm212 = vcmask 1040384
    %v214 = vsel %vm212, %v190, 0
    %216 = vmatprep.subr.mxu0 0.0
    %217 = vmatpush1.msra.mxu0 0.0
    %218 = vmatprep.subr.mxu0 0.0
    %219 = vmatpush1.msra.mxu0 0.0
    %220 = vmatprep.subr.mxu0 0.0
    %221 = vmatpush1.msra.mxu0 0.0
    %222 = vmatprep.subr.mxu0 0.0
    %223 = vmatpush1.msra.mxu0 0.0
    %224 = vmatprep.subr.mxu0 0.0
    %225 = vmatpush1.msra.mxu0 0.0
    %226 = vmatprep.subr.mxu0 0.0
    %227 = vmatpush1.msra.mxu0 0.0
    %228 = vmatprep.subr.mxu0 0.0
    %229 = vmatpush1.msra.mxu0 0.0
    %230 = vmatprep.subr.mxu0 0.0
    %231 = vmatpush1.msra.mxu0 %v214
    %232 = vmatprep.subr.mxu0 0.0
    %233 = vmatpush1.msra.mxu0 %v189
    %234 = vmatprep.subr.mxu0 0.0
    %235 = vmatpush1.msra.mxu0 %v188
    %236 = vmatprep.subr.mxu0 0.0
    %237 = vmatpush1.msra.mxu0 %v187
    %238 = vmatprep.subr.mxu0 0.0
    %239 = vmatpush1.msra.mxu0 %v186
    %240 = vmatprep.subr.mxu0 0.0
    %241 = vmatpush1.msra.mxu0 %v185
    %242 = vmatprep.subr.mxu0 0.0
    %243 = vmatpush1.msra.mxu0 %v184
    %244 = vmatprep.subr.mxu0 0.0
    %245 = vmatpush1.msra.mxu0 %v183
    %246 = vmatprep.subr.mxu0 0.0
    %247 = vmatpush1.msra.mxu0 %v182
    %248 = vmatprep.subr.mxu0 0.0
    %249 = vmatpush2.msra.mxu0 0.0
    %250 = vmatprep.subr.mxu0 0.0
    %251 = vmatpush2.msra.mxu0 0.0
    %252 = vmatprep.subr.mxu0 0.0
    %253 = vmatpush2.msra.mxu0 0.0
    %254 = vmatprep.subr.mxu0 0.0
    %255 = vmatpush2.msra.mxu0 0.0
    %256 = vmatprep.subr.mxu0 0.0
    %257 = vmatpush2.msra.mxu0 0.0
    %258 = vmatprep.subr.mxu0 0.0
    %259 = vmatpush2.msra.mxu0 0.0
    %260 = vmatprep.subr.mxu0 0.0
    %261 = vmatpush2.msra.mxu0 0.0
    %262 = vmatprep.subr.mxu0 0.0
    %263 = vmatpush2.msra.mxu0 0.0
    %264 = vmatprep.subr.mxu0 0.0
    %265 = vmatpush2.msra.mxu0 0.0
    %266 = vmatprep.subr.mxu0 0.0
    %267 = vmatpush2.msra.mxu0 0.0
    %268 = vmatprep.subr.mxu0 0.0
    %269 = vmatpush2.msra.mxu0 0.0
    %270 = vmatprep.subr.mxu0 0.0
    %271 = vmatpush2.msra.mxu0 0.0
    %272 = vmatprep.subr.mxu0 0.0
    %273 = vmatpush2.msra.mxu0 0.0
    %274 = vmatprep.subr.mxu0 0.0
    %275 = vmatpush2.msra.mxu0 0.0
    %276 = vmatprep.subr.mxu0 0.0
    %277 = vmatpush2.msra.mxu0 0.0
    %278 = vmatprep.subr.mxu0 0.0
    %279 = vmatpush2.msra.mxu0 0.0
    %280 = vmatprep.mubr.f32.mxu0 0.0
    %281 = vmatmul.mubr.f32.gmra.mxu0 %v198
    %v282 = vpop.f32.mrf.mxu0
    %v283 = vadd.f32 0.0, %v282
    %v284 = vpop.f32.mrf.mxu0
    %285 = vmatprep.mubr.f32.mxu0 0.0
    %286 = vmatmul.mubr.f32.gmra.mxu0 %v201
    %v287 = vpop.f32.mrf.mxu0
    %v288 = vadd.f32 0.0, %v287
    %v289 = vpop.f32.mrf.mxu0
    %290 = vmatprep.mubr.f32.mxu0 0.0
    %291 = vmatmul.mubr.f32.gmra.mxu0 %v204
    %v292 = vpop.f32.mrf.mxu0
    %v293 = vadd.f32 0.0, %v292
    %v294 = vpop.f32.mrf.mxu0
    %295 = vmatprep.mubr.f32.mxu0 0.0
    %296 = vmatmul.mubr.f32.gmra.mxu0 %v207
    %v297 = vpop.f32.mrf.mxu0
    %v298 = vadd.f32 0.0, %v297
    %v299 = vpop.f32.mrf.mxu0
    %300 = vmatprep.mubr.f32.mxu0 0.0
    %301 = vmatmul.mubr.f32.gmra.mxu0 %v210
    %v302 = vpop.f32.mrf.mxu0
    %v303 = vadd.f32 0.0, %v302
    %v304 = vpop.f32.mrf.mxu0
    %305 = vdwg.mxu0
    %v306 = vmax.f32 %v283, 0.0
    %v307 = vmax.f32 %v288, 0.0
    %v308 = vmax.f32 %v293, 0.0
    %v309 = vmax.f32 %v298, 0.0
    %v310 = vmax.f32 %v303, 0.0
    %v311 = vld [vmem:[#allocation3 + $0x70] sm:$0xff]
    %v312 = vld [vmem:[#allocation3 + $0x78] sm:$0xff]
    %v313 = vld [vmem:[#allocation3 + $0x80] sm:$0x1]
    %vm314 = vcmask 269312
    %v316 = vsel %vm314, %v311, 0
    %v319 = vsel %vm314, %v312, 0
    %v322 = vsel %vm314, %v313, 0
    %v325 = vsel %vm212, %v310, 0
    %327 = vmatprep.subr.mxu0 0.0
    %328 = vmatpush1.msra.mxu0 0.0
    %329 = vmatprep.subr.mxu0 0.0
    %330 = vmatpush1.msra.mxu0 0.0
    %331 = vmatprep.subr.mxu0 0.0
    %332 = vmatpush1.msra.mxu0 0.0
    %333 = vmatprep.subr.mxu0 0.0
    %334 = vmatpush1.msra.mxu0 0.0
    %335 = vmatprep.subr.mxu0 0.0
    %336 = vmatpush1.msra.mxu0 0.0
    %337 = vmatprep.subr.mxu0 0.0
    %338 = vmatpush1.msra.mxu0 0.0
    %339 = vmatprep.subr.mxu0 0.0
    %340 = vmatpush1.msra.mxu0 0.0
    %341 = vmatprep.subr.mxu0 0.0
    %342 = vmatpush1.msra.mxu0 0.0
    %343 = vmatprep.subr.mxu0 0.0
    %344 = vmatpush1.msra.mxu0 0.0
    %345 = vmatprep.subr.mxu0 0.0
    %346 = vmatpush1.msra.mxu0 0.0
    %347 = vmatprep.subr.mxu0 0.0
    %348 = vmatpush1.msra.mxu0 0.0
    %349 = vmatprep.subr.mxu0 0.0
    %350 = vmatpush1.msra.mxu0 %v325
    %351 = vmatprep.subr.mxu0 0.0
    %352 = vmatpush1.msra.mxu0 %v309
    %353 = vmatprep.subr.mxu0 0.0
    %354 = vmatpush1.msra.mxu0 %v308
    %355 = vmatprep.subr.mxu0 0.0
    %356 = vmatpush1.msra.mxu0 %v307
    %357 = vmatprep.subr.mxu0 0.0
    %358 = vmatpush1.msra.mxu0 %v306
    %359 = vmatprep.subr.mxu0 0.0
    %360 = vmatpush2.msra.mxu0 0.0
    %361 = vmatprep.subr.mxu0 0.0
    %362 = vmatpush2.msra.mxu0 0.0
    %363 = vmatprep.subr.mxu0 0.0
    %364 = vmatpush2.msra.mxu0 0.0
    %365 = vmatprep.subr.mxu0 0.0
    %366 = vmatpush2.msra.mxu0 0.0
    %367 = vmatprep.subr.mxu0 0.0
    %368 = vmatpush2.msra.mxu0 0.0
    %369 = vmatprep.subr.mxu0 0.0
    %370 = vmatpush2.msra.mxu0 0.0
    %371 = vmatprep.subr.mxu0 0.0
    %372 = vmatpush2.msra.mxu0 0.0
    %373 = vmatprep.subr.mxu0 0.0
    %374 = vmatpush2.msra.mxu0 0.0
    %375 = vmatprep.subr.mxu0 0.0
    %376 = vmatpush2.msra.mxu0 0.0
    %377 = vmatprep.subr.mxu0 0.0
    %378 = vmatpush2.msra.mxu0 0.0
    %379 = vmatprep.subr.mxu0 0.0
    %380 = vmatpush2.msra.mxu0 0.0
    %381 = vmatprep.subr.mxu0 0.0
    %382 = vmatpush2.msra.mxu0 0.0
    %383 = vmatprep.subr.mxu0 0.0
    %384 = vmatpush2.msra.mxu0 0.0
    %385 = vmatprep.subr.mxu0 0.0
    %386 = vmatpush2.msra.mxu0 0.0
    %387 = vmatprep.subr.mxu0 0.0
    %388 = vmatpush2.msra.mxu0 0.0
    %389 = vmatprep.subr.mxu0 0.0
    %390 = vmatpush2.msra.mxu0 0.0
    %391 = vmatprep.mubr.f32.mxu0 0.0
    %392 = vmatmul.mubr.f32.gmra.mxu0 %v316
    %v393 = vpop.f32.mrf.mxu0
    %v394 = vadd.f32 0.0, %v393
    %v395 = vpop.f32.mrf.mxu0
    %396 = vmatprep.mubr.f32.mxu0 0.0
    %397 = vmatmul.mubr.f32.gmra.mxu0 %v319
    %v398 = vpop.f32.mrf.mxu0
    %v399 = vadd.f32 0.0, %v398
    %v400 = vpop.f32.mrf.mxu0
    %401 = vmatprep.mubr.f32.mxu0 0.0
    %402 = vmatmul.mubr.f32.gmra.mxu0 %v322
    %v403 = vpop.f32.mrf.mxu0
    %v404 = vadd.f32 0.0, %v403
    %v405 = vpop.f32.mrf.mxu0
    %406 = vdwg.mxu0
    %v407 = vmax.f32 %v394, 0.0
    %v408 = vmax.f32 %v399, 0.0
    %v409 = vmax.f32 %v404, 0.0
    %v410 = vld [vmem:[#allocation3 + $0x88] sm:$0x3]
    %vm411 = vcmask 138240
    %v413 = vsel %vm411, %v410, 0
    %v416 = vsel %vm212, %v409, 0
    %418 = vmatprep.subr.mxu0 0.0
    %419 = vmatpush1.msra.mxu0 0.0
    %420 = vmatprep.subr.mxu0 0.0
    %421 = vmatpush1.msra.mxu0 0.0
    %422 = vmatprep.subr.mxu0 0.0
    %423 = vmatpush1.msra.mxu0 0.0
    %424 = vmatprep.subr.mxu0 0.0
    %425 = vmatpush1.msra.mxu0 0.0
    %426 = vmatprep.subr.mxu0 0.0
    %427 = vmatpush1.msra.mxu0 0.0
    %428 = vmatprep.subr.mxu0 0.0
    %429 = vmatpush1.msra.mxu0 0.0
    %430 = vmatprep.subr.mxu0 0.0
    %431 = vmatpush1.msra.mxu0 0.0
    %432 = vmatprep.subr.mxu0 0.0
    %433 = vmatpush1.msra.mxu0 0.0
    %434 = vmatprep.subr.mxu0 0.0
    %435 = vmatpush1.msra.mxu0 0.0
    %436 = vmatprep.subr.mxu0 0.0
    %437 = vmatpush1.msra.mxu0 0.0
    %438 = vmatprep.subr.mxu0 0.0
    %439 = vmatpush1.msra.mxu0 0.0
    %440 = vmatprep.subr.mxu0 0.0
    %441 = vmatpush1.msra.mxu0 0.0
    %442 = vmatprep.subr.mxu0 0.0
    %443 = vmatpush1.msra.mxu0 0.0
    %444 = vmatprep.subr.mxu0 0.0
    %445 = vmatpush1.msra.mxu0 %v416
    %446 = vmatprep.subr.mxu0 0.0
    %447 = vmatpush1.msra.mxu0 %v408
    %448 = vmatprep.subr.mxu0 0.0
    %449 = vmatpush1.msra.mxu0 %v407
    %450 = vmatprep.subr.mxu0 0.0
    %451 = vmatpush2.msra.mxu0 0.0
    %452 = vmatprep.subr.mxu0 0.0
    %453 = vmatpush2.msra.mxu0 0.0
    %454 = vmatprep.subr.mxu0 0.0
    %455 = vmatpush2.msra.mxu0 0.0
    %456 = vmatprep.subr.mxu0 0.0
    %457 = vmatpush2.msra.mxu0 0.0
    %458 = vmatprep.subr.mxu0 0.0
    %459 = vmatpush2.msra.mxu0 0.0
    %460 = vmatprep.subr.mxu0 0.0
    %461 = vmatpush2.msra.mxu0 0.0
    %462 = vmatprep.subr.mxu0 0.0
    %463 = vmatpush2.msra.mxu0 0.0
    %464 = vmatprep.subr.mxu0 0.0
    %465 = vmatpush2.msra.mxu0 0.0
    %466 = vmatprep.subr.mxu0 0.0
    %467 = vmatpush2.msra.mxu0 0.0
    %468 = vmatprep.subr.mxu0 0.0
    %469 = vmatpush2.msra.mxu0 0.0
    %470 = vmatprep.subr.mxu0 0.0
    %471 = vmatpush2.msra.mxu0 0.0
    %472 = vmatprep.subr.mxu0 0.0
    %473 = vmatpush2.msra.mxu0 0.0
    %474 = vmatprep.subr.mxu0 0.0
    %475 = vmatpush2.msra.mxu0 0.0
    %476 = vmatprep.subr.mxu0 0.0
    %477 = vmatpush2.msra.mxu0 0.0
    %478 = vmatprep.subr.mxu0 0.0
    %479 = vmatpush2.msra.mxu0 0.0
    %480 = vmatprep.subr.mxu0 0.0
    %481 = vmatpush2.msra.mxu0 0.0
    %482 = vmatprep.mubr.f32.mxu0 0.0
    %483 = vmatmul.mubr.f32.gmra.mxu0 %v413
    %v484 = vpop.f32.mrf.mxu0
    %v485 = vadd.f32 0.0, %v484
    %v486 = vpop.f32.mrf.mxu0
    %487 = vdwg.mxu0
    %v488 = vtanh.pop %v485
    %v489 = vstv %s29
    %v490 = vmul.f32 %v488, %v489
    %v491 = vand.u32 2147483647, %v485
    %v492 = vsub.f32 0.0, %v491
    %v493 = vmul.f32 %v492, 1.442695
    %v494 = vpow.pop %v493
    %v495 = vadd.f32 %v494, 1.0
    %v496 = vlog2.pop %v495
    %v497 = vmul.f32 %v496, 0.6931472
    %v498 = vmul.f32 -0.5, %v494
    %v499 = vadd.f32 %v498, 1.0
    %v500 = vmul.f32 %v499, %v494
    %v501 = vand.u32 2147483647, %v494
    %vm502 = vcmp.lt.f32.partialorder %v501, 0.0004427343
    %v503 = vsel %vm502, %v500, %v497
    %v504 = vmax.f32 %v485, 0.0
    %v505 = vadd.f32 %v503, %v504
    %v506 = vlaneseq
    %v507 = vshrl.u32 %v506, 7
    %vm508 = vcmp.lt.s32.totalorder %v507, 1
    %v509 = vsel %vm508, %v490, %v505
    %vm510 = vcmask 58368
    %511 = vst.msk [vmem:[%s3] sm:$0x3] %vm510, %v509
    // Predicated region
    $region18: #{actor_forward.1} parent=1 // pred_check
      _
    $region19: #{actor_forward.1} parent=1 // pred_check_branch
      %513 = sbr.rel (0) target = $region21
    $region20: #{actor_forward.1} parent=1 // pred_region
      _
    $region21: #{actor_forward.1} parent=1 // pred_fallthru
      _
    // Predicated region
    $region22: #{actor_forward.1} parent=1 // pred_check
      _
    $region23: #{actor_forward.1} parent=1 // pred_check_branch
      %515 = sbr.rel (0) target = $region25
    $region24: #{actor_forward.1} parent=1 // pred_region
      _
    $region25: #{actor_forward.1} parent=1 // pred_fallthru
      _
    %516 = vsyncpa [#allocation4], 1

</llo_original>
